<compile_context>
chip_gen: v7x
topology: tpu7x:2x2x1
jax: 0.10.0
libtpu: 0.0.40
codegen_flags: <defaults>
</compile_context>

<pallas_src>
import functools

import jax
import jax.numpy as jnp
from jax.experimental import pallas as pl
from jax.experimental.pallas import tpu as pltpu


def _round_up(x, m):
    return ((x + m - 1) // m) * m


def _choose_tile_b(batch, preferred_tile_b):
    """Pick the batch tile: as large as `preferred_tile_b` (amortize per-step
    overhead) but keep >= 2 grid steps when the batch allows it (v7x has two
    TensorCores) and stay 128-aligned (full sublane/lane tiles)."""
    preferred = max(128, _round_up(preferred_tile_b, 128))
    b128 = _round_up(max(batch, 1), 128)
    tile = b128 if b128 < 256 else min(preferred, b128 // 2)
    return max(128, _round_up(tile, 128))


def _mlp_regressor_kernel(x_ref, w1_ref, b1_ref, w2_ref, b2_ref, w3_ref,
                          b3_ref, o_ref):
    # Layer 1: (TILE_B, Din) @ (Din, Hp) + (1, Hp), ReLU.  x is cast to the
    # matmul dtype per-tile (bf16 by default); accumulation is always f32.
    x = x_ref[...].astype(w1_ref.dtype)
    h1 = jnp.dot(x, w1_ref[...], preferred_element_type=jnp.float32)
    h1 = jnp.maximum(h1 + b1_ref[...], 0.0)
    # Layer 2: (TILE_B, Hp) @ (Hp, Hp) + (1, Hp), ReLU.
    h2 = jnp.dot(h1.astype(w2_ref.dtype), w2_ref[...],
                 preferred_element_type=jnp.float32)
    h2 = jnp.maximum(h2 + b2_ref[...], 0.0)
    # Output layer: VPU multiply + lane reduction instead of an N=1 matmul
    # (an N=1 matmul wastes 127/128+ of the MXU).  keepdims keeps the
    # sublane-major result as a (TILE_B, 1) column so the store needs no
    # relayout.  b3 is a scalar read from SMEM.
    out = jnp.sum(h2 * w3_ref[...], axis=-1, keepdims=True) + b3_ref[0, 0]
    o_ref[...] = out.astype(o_ref.dtype)


def prepare_dnn_params(w1, b1, w2, b2, w3, b3, compute_dtype=jnp.bfloat16):
    """One-time parameter prep (hoisted out of the forward path): zero-pad the
    hidden dim to a 128-lane multiple and cast the matmul weights to
    `compute_dtype`; biases and the final weight row stay float32."""
    d_in, hidden = w1.shape
    h_pad = _round_up(hidden, 128)
    f32 = jnp.float32
    w1p = jnp.zeros((d_in, h_pad), compute_dtype).at[:, :hidden].set(
        w1.astype(compute_dtype))
    b1p = jnp.zeros((1, h_pad), f32).at[:, :hidden].set(
        b1.reshape(1, hidden).astype(f32))
    w2p = jnp.zeros((h_pad, h_pad), compute_dtype).at[:hidden, :hidden].set(
        w2.astype(compute_dtype))
    b2p = jnp.zeros((1, h_pad), f32).at[:, :hidden].set(
        b2.reshape(1, hidden).astype(f32))
    w3p = jnp.zeros((1, h_pad), f32).at[:, :hidden].set(
        w3.reshape(1, hidden).astype(f32))
    b3p = b3.reshape(1, 1).astype(f32)
    return (w1p, b1p, w2p, b2p, w3p, b3p)


@functools.partial(jax.jit, static_argnames=("preferred_tile_b",))
def dnn_regressor_forward(x, params, *, preferred_tile_b=1024):
    """Fused 3-layer MLP regressor forward as a single batch-tiled Pallas kernel.

    x : (B, Din) float32/bfloat16 ; params = prepare_dnn_params(...)
    returns (B, 1) float32
    """
    w1p, b1p, w2p, b2p, w3p, b3p = params
    batch, d_in = x.shape
    h_pad = w1p.shape[1]
    assert w1p.shape[0] == d_in

    tile_b = _choose_tile_b(batch, preferred_tile_b)
    grid = (pl.cdiv(batch, tile_b),)   # ragged last block handled by Pallas

    return pl.pallas_call(
        _mlp_regressor_kernel,
        out_shape=jax.ShapeDtypeStruct((batch, 1), jnp.float32),
        grid=grid,
        in_specs=[
            # x: tiled over batch (auto double-buffered HBM<->VMEM); no
            # wrapper-side padding/copy of the only O(B) input stream.
            pl.BlockSpec((tile_b, d_in), lambda i: (i, 0)),
            # weights/biases: constant index_map -> VMEM-resident, no re-DMA.
            pl.BlockSpec((d_in, h_pad), lambda i: (0, 0)),
            pl.BlockSpec((1, h_pad), lambda i: (0, 0)),
            pl.BlockSpec((h_pad, h_pad), lambda i: (0, 0)),
            pl.BlockSpec((1, h_pad), lambda i: (0, 0)),
            pl.BlockSpec((1, h_pad), lambda i: (0, 0)),
            # b3 scalar in SMEM (no padded VMEM tile / extra DMA descriptor).
            pl.BlockSpec((1, 1), lambda i: (0, 0),
                         memory_space=pltpu.MemorySpace.SMEM),
        ],
        out_specs=pl.BlockSpec((tile_b, 1), lambda i: (i, 0)),
        compiler_params=pltpu.CompilerParams(
            dimension_semantics=("parallel",),
            vmem_limit_bytes=32 * 1024 * 1024,
        ),
    )(x, w1p, b1p, w2p, b2p, w3p, b3p)


def _reference_forward(x, w1, b1, w2, b2, w3, b3):
    h1 = jnp.maximum(x @ w1 + b1, 0.0)
    h2 = jnp.maximum(h1 @ w2 + b2, 0.0)
    return h2 @ w3 + b3


if __name__ == "__main__":
    key = jax.random.PRNGKey(0)
    k_x, k_w1, k_b1, k_w2, k_b2, k_w3, k_b3 = jax.random.split(key, 7)

    # Small shapes consistent with the implied MLP regressor; batch chosen so
    # the grid has >1 step and exercises the ragged-last-block path (200/128).
    batch, d_in, hidden = 200, 8, 32

    x = jax.random.normal(k_x, (batch, d_in), dtype=jnp.float32)
    w1 = jax.random.normal(k_w1, (d_in, hidden), dtype=jnp.float32) * 0.1
    b1 = jax.random.normal(k_b1, (1, hidden), dtype=jnp.float32) * 0.1
    w2 = jax.random.normal(k_w2, (hidden, hidden), dtype=jnp.float32) * 0.1
    b2 = jax.random.normal(k_b2, (1, hidden), dtype=jnp.float32) * 0.1
    w3 = jax.random.normal(k_w3, (hidden, 1), dtype=jnp.float32) * 0.1
    b3 = jax.random.normal(k_b3, (1, 1), dtype=jnp.float32) * 0.1

    ref = _reference_forward(x, w1, b1, w2, b2, w3, b3)

    # f32 path: tight correctness check against the pure-JAX reference.
    params_f32 = prepare_dnn_params(w1, b1, w2, b2, w3, b3,
                                    compute_dtype=jnp.float32)
    out_f32 = jax.block_until_ready(dnn_regressor_forward(x, params_f32))
    assert out_f32.shape == (batch, 1)
    assert jnp.allclose(out_f32, ref, atol=1e-5, rtol=1e-5), "f32 mismatch"

    # Default bf16 matmul-operand path (MXU/HBM roofline path at large batch);
    # bf16 operands => looser tolerance vs the f32 reference.
    params_bf16 = prepare_dnn_params(w1, b1, w2, b2, w3, b3)
    out_bf16 = jax.block_until_ready(dnn_regressor_forward(x, params_bf16))
    assert out_bf16.shape == (batch, 1)
    assert jnp.allclose(out_bf16, ref, atol=5e-2, rtol=5e-2), "bf16 mismatch"

    print("KERNEL_OK")
</pallas_src>

<mosaic_0001>
module attributes {stable_mosaic.version = 11 : i64} {
  func.func @_mlp_regressor_kernel(%arg0: i32, %arg1: memref<128x8xf32, #tpu.memory_space<vmem>>, %arg2: memref<8x128xf32, #tpu.memory_space<vmem>>, %arg3: memref<1x128xf32, #tpu.memory_space<vmem>>, %arg4: memref<128x128xf32, #tpu.memory_space<vmem>>, %arg5: memref<1x128xf32, #tpu.memory_space<vmem>>, %arg6: memref<1x128xf32, #tpu.memory_space<vmem>>, %arg7: memref<1x1xf32, #tpu.memory_space<smem>>, %arg8: memref<128x1xf32, #tpu.memory_space<vmem>>) attributes {dimension_semantics = [#tpu.dimension_semantics<parallel>], iteration_bounds = array<i64: 2>, scalar_prefetch = 0 : i64, scratch_operands = 0 : i64, tpu.core_type = #tpu.core_type<tc>, window_params = [{transform_indices = @transform_0, window_bounds = array<i64: 128, 8>}, {pipeline_mode = #tpu.pipeline_mode<synchronous>, transform_indices = @transform_1, window_bounds = array<i64: 8, 128>}, {pipeline_mode = #tpu.pipeline_mode<synchronous>, transform_indices = @transform_2, window_bounds = array<i64: 1, 128>}, {pipeline_mode = #tpu.pipeline_mode<synchronous>, transform_indices = @transform_3, window_bounds = array<i64: 128, 128>}, {pipeline_mode = #tpu.pipeline_mode<synchronous>, transform_indices = @transform_4, window_bounds = array<i64: 1, 128>}, {pipeline_mode = #tpu.pipeline_mode<synchronous>, transform_indices = @transform_5, window_bounds = array<i64: 1, 128>}, {transform_indices = @transform_6, window_bounds = array<i64: 1, 1>}, {transform_indices = @transform_7, window_bounds = array<i64: 128, 1>}]} {
    %c0 = arith.constant 0 : index
    %c0_0 = arith.constant 0 : index
    %0 = vector.load %arg1[%c0, %c0_0] : memref<128x8xf32, #tpu.memory_space<vmem>>, vector<128x8xf32>
    %c0_1 = arith.constant 0 : index
    %c0_2 = arith.constant 0 : index
    %1 = vector.load %arg2[%c0_1, %c0_2] : memref<8x128xf32, #tpu.memory_space<vmem>>, vector<8x128xf32>
    %cst = arith.constant dense<0.000000e+00> : vector<128x128xf32>
    %2 = tpu.matmul %0, %1, %cst {dimension_numbers = #tpu.dot_dimension_numbers<[1], [0], [0], [1], [0, 0, 1, 1], [], []>} : vector<128x8xf32>, vector<8x128xf32>, vector<128x128xf32> -> vector<128x128xf32>
    %c0_3 = arith.constant 0 : index
    %c0_4 = arith.constant 0 : index
    %3 = vector.load %arg3[%c0_3, %c0_4] : memref<1x128xf32, #tpu.memory_space<vmem>>, vector<1x128xf32>
    %4 = vector.broadcast %3 : vector<1x128xf32> to vector<128x128xf32>
    %5 = arith.addf %2, %4 : vector<128x128xf32>
    %cst_5 = arith.constant 0.000000e+00 : f32
    %6 = vector.broadcast %cst_5 : f32 to vector<128x128xf32>
    %7 = arith.maximumf %5, %6 : vector<128x128xf32>
    %c0_6 = arith.constant 0 : index
    %c0_7 = arith.constant 0 : index
    %8 = vector.load %arg4[%c0_6, %c0_7] : memref<128x128xf32, #tpu.memory_space<vmem>>, vector<128x128xf32>
    %cst_8 = arith.constant dense<0.000000e+00> : vector<128x128xf32>
    %9 = tpu.matmul %7, %8, %cst_8 {dimension_numbers = #tpu.dot_dimension_numbers<[1], [0], [0], [1], [0, 0, 1, 1], [], []>} : vector<128x128xf32>, vector<128x128xf32>, vector<128x128xf32> -> vector<128x128xf32>
    %c0_9 = arith.constant 0 : index
    %c0_10 = arith.constant 0 : index
    %10 = vector.load %arg5[%c0_9, %c0_10] : memref<1x128xf32, #tpu.memory_space<vmem>>, vector<1x128xf32>
    %11 = vector.broadcast %10 : vector<1x128xf32> to vector<128x128xf32>
    %12 = arith.addf %9, %11 : vector<128x128xf32>
    %cst_11 = arith.constant 0.000000e+00 : f32
    %13 = vector.broadcast %cst_11 : f32 to vector<128x128xf32>
    %14 = arith.maximumf %12, %13 : vector<128x128xf32>
    %c0_12 = arith.constant 0 : index
    %c0_13 = arith.constant 0 : index
    %15 = vector.load %arg6[%c0_12, %c0_13] : memref<1x128xf32, #tpu.memory_space<vmem>>, vector<1x128xf32>
    %16 = vector.broadcast %15 : vector<1x128xf32> to vector<128x128xf32>
    %17 = arith.mulf %14, %16 : vector<128x128xf32>
    %cst_14 = arith.constant dense<0.000000e+00> : vector<128xf32>
    %18 = vector.multi_reduction <add>, %17, %cst_14 [1] : vector<128x128xf32> to vector<128xf32>
    %19 = vector.shape_cast %18 : vector<128xf32> to vector<128x1xf32>
    %c0_15 = arith.constant 0 : index
    %c0_16 = arith.constant 0 : index
    %20 = memref.load %arg7[%c0_15, %c0_16] : memref<1x1xf32, #tpu.memory_space<smem>>
    %21 = vector.broadcast %20 : f32 to vector<128x1xf32>
    %22 = arith.addf %19, %21 : vector<128x1xf32>
    %c0_17 = arith.constant 0 : index
    %c0_18 = arith.constant 0 : index
    %23 = vector.load %arg8[%c0_17, %c0_18] : memref<128x1xf32, #tpu.memory_space<vmem>>, vector<128x1xf32>
    tpu.vector_store %arg8[%c0_17, %c0_18], %22 {strides = array<i32>} : memref<128x1xf32, #tpu.memory_space<vmem>>, vector<128x1xf32>,
    return
  }
  func.func @transform_0(%arg0: i32) -> (i32, i32) {
    %c0_i32 = arith.constant 0 : i32
    %c0_i32_0 = arith.constant 0 : i32
    return %arg0, %c0_i32 : i32, i32
  }
  func.func @transform_1(%arg0: i32) -> (i32, i32) {
    %c0_i32 = arith.constant 0 : i32
    %c0_i32_0 = arith.constant 0 : i32
    %c0_i32_1 = arith.constant 0 : i32
    return %c0_i32, %c0_i32_0 : i32, i32
  }
  func.func @transform_2(%arg0: i32) -> (i32, i32) {
    %c0_i32 = arith.constant 0 : i32
    %c0_i32_0 = arith.constant 0 : i32
    %c0_i32_1 = arith.constant 0 : i32
    return %c0_i32, %c0_i32_0 : i32, i32
  }
  func.func @transform_3(%arg0: i32) -> (i32, i32) {
    %c0_i32 = arith.constant 0 : i32
    %c0_i32_0 = arith.constant 0 : i32
    %c0_i32_1 = arith.constant 0 : i32
    return %c0_i32, %c0_i32_0 : i32, i32
  }
  func.func @transform_4(%arg0: i32) -> (i32, i32) {
    %c0_i32 = arith.constant 0 : i32
    %c0_i32_0 = arith.constant 0 : i32
    %c0_i32_1 = arith.constant 0 : i32
    return %c0_i32, %c0_i32_0 : i32, i32
  }
  func.func @transform_5(%arg0: i32) -> (i32, i32) {
    %c0_i32 = arith.constant 0 : i32
    %c0_i32_0 = arith.constant 0 : i32
    %c0_i32_1 = arith.constant 0 : i32
    return %c0_i32, %c0_i32_0 : i32, i32
  }
  func.func @transform_6(%arg0: i32) -> (i32, i32) {
    %c0_i32 = arith.constant 0 : i32
    %c0_i32_0 = arith.constant 0 : i32
    %c0_i32_1 = arith.constant 0 : i32
    return %c0_i32, %c0_i32_0 : i32, i32
  }
  func.func @transform_7(%arg0: i32) -> (i32, i32) {
    %c0_i32 = arith.constant 0 : i32
    %c0_i32_0 = arith.constant 0 : i32
    return %arg0, %c0_i32 : i32, i32
  }
}

</mosaic_0001>

<llo_original>
// kernel: dnn_regressor_forward.1
$region0: #{dnn_regressor_forward.1}
  #allocation0 [shape = 'u32[]', space=smem, size = 0x4, offset = 0x4, fixed_abs, tag = 'smem constant byte address 0x4 - core index']
  #allocation1 [shape = 'u32[144,128]{1,0:T(1,128)}', space=vmem, size = 0x12000, scoped, tag = 'internal scratch']
  #allocation2 [shape = 'f32[1,1]{1,0:T(1,128)S(6)}', space=smem, size = 0x200, scoped, tag = 'scoped memory for dnn_regressor_forward.1']
  %s0 = inlined_call_operand.vmem [shape: f32[200,8], index: 0, kind: input, shape index: {}]
  %s1 = inlined_call_operand.vmem [shape: f32[8,128], index: 1, kind: input, shape index: {}]
  %s2 = inlined_call_operand.vmem [shape: f32[1,128], index: 2, kind: input, shape index: {}]
  %s3 = inlined_call_operand.vmem [shape: f32[128,128], index: 3, kind: input, shape index: {}]
  %s4 = inlined_call_operand.vmem [shape: f32[1,128], index: 4, kind: input, shape index: {}]
  %s5 = inlined_call_operand.vmem [shape: f32[1,128], index: 5, kind: input, shape index: {}]
  %s6 = inlined_call_operand.<no memory space> [shape: f32[1,1], index: 6, kind: input, shape index: {}]
  %s7 = inlined_call_operand.vmem [shape: f32[200,1], index: 7, kind: output, shape index: {}]
  %s8 = sld [smem:[#allocation0]]
  $region109: #{dnn_regressor_forward.1} parent=0
    _
  %s10 = ssub.s32 1, %s8
  %s11 = scalar_select 0, %s10, %s8
  %12 = sst [smem:[#allocation2]] %s6
  $region1: #{dnn_regressor_forward.1} parent=0
    #allocation3 [shape = 'u8[131072]{0}', space=vmem, size = 0x20000, scoped, tag = 'output window, operand 0']
    loop: start=0, step=1, limit=4
    $region2: #{dnn_regressor_forward.1} parent=1 // loop_pre_header
      _
    $region3: #{dnn_regressor_forward.1} parent=1 // loop_header
      %s14 = sphi 0, %s18
      %p15 = scmp.ge.s32.totalorder %s14, 4
      %s24 = sphi 0, %s26
      %s27 = sphi 0, %s24
      %s28 = sphi 0, %s27
      %s44 = sphi 0, %s28
      %s48 = sphi 0, %s48
      %s50 = sphi 0, %s48
      %s51 = sphi 0, %s50
      %s65 = sphi 0, %s51
      %s69 = sphi 0, %s69
      %s71 = sphi 0, %s69
      %s72 = sphi 0, %s71
      %s86 = sphi 0, %s72
      %s90 = sphi 0, %s90
      %s92 = sphi 0, %s90
      %s93 = sphi 0, %s92
      %s107 = sphi 0, %s93
      %s111 = sphi 0, %s111
      %s113 = sphi 0, %s111
      %s114 = sphi 0, %s113
      %s128 = sphi 0, %s114
      %s132 = sphi 0, %s132
      %s134 = sphi 0, %s132
      %s135 = sphi 0, %s134
      %s149 = sphi 0, %s135
      %s153 = sphi 0, %s153
      %s155 = sphi 0, %s153
      %s156 = sphi 0, %s155
      %s170 = sphi 0, %s156
      %s176 = sphi 0, %s178
      %s179 = sphi 0, %s176
      %s180 = sphi 0, %s179
      %s196 = sphi 0, %s180
    $region4: #{dnn_regressor_forward.1} parent=1 // loop_header_branch
      %17 = sbr.rel (%p15) target = $region8
    $region5: #{dnn_regressor_forward.1} parent=1 // loop_body
      %s19 = ssub.s32 %s14, 1
      %s20 = ssub.s32 %s14, 2
      %s21 = sadd.s32 %s14, 1
      %s22 = ssub.s32 %s14, %s21
      %p23 = scmp.eq.s32.totalorder %s22, 0
      %s25 = sadd.s32 %s24, 1
      %s26 = scalar_select %p23, %s24, %s25
      %p29 = pneg %p23
      %p30 = scmp.eq.s32.totalorder %s14, 1
      %p31 = por %p29, %p30
      %p32 = scmp.ne.s32.totalorder %s24, %s27
      %p33 = scmp.eq.s32.totalorder %s14, 0
      %p34 = por %p32, %p33
      %p35 = scmp.ne.s32.totalorder %s24, %s27
      %p36 = scmp.eq.s32.totalorder %s19, 1
      %p37 = por %p35, %p36
      %p38 = scmp.ne.s32.totalorder %s27, %s28
      %p39 = scmp.eq.s32.totalorder %s19, 0
      %p40 = por %p38, %p39
      %p41 = scmp.ne.s32.totalorder %s27, %s28
      %p42 = scmp.eq.s32.totalorder %s20, 1
      %p43 = por %p41, %p42
      %p45 = scmp.ne.s32.totalorder %s28, %s44
      %p46 = scmp.eq.s32.totalorder %s20, 0
      %p47 = por %p45, %p46
      %s49 = sadd.s32 %s48, 1
      %p52 = scmp.eq.s32.totalorder %s14, 1
      %p53 = scmp.ne.s32.totalorder %s48, %s50
      %p54 = scmp.eq.s32.totalorder %s14, 0
      %p55 = por %p53, %p54
      %p56 = scmp.ne.s32.totalorder %s48, %s50
      %p57 = scmp.eq.s32.totalorder %s19, 1
      %p58 = por %p56, %p57
      %p59 = scmp.ne.s32.totalorder %s50, %s51
      %p60 = scmp.eq.s32.totalorder %s19, 0
      %p61 = por %p59, %p60
      %p62 = scmp.ne.s32.totalorder %s50, %s51
      %p63 = scmp.eq.s32.totalorder %s20, 1
      %p64 = por %p62, %p63
      %p66 = scmp.ne.s32.totalorder %s51, %s65
      %p67 = scmp.eq.s32.totalorder %s20, 0
      %p68 = por %p66, %p67
      %s70 = sadd.s32 %s69, 1
      %p73 = scmp.eq.s32.totalorder %s14, 1
      %p74 = scmp.ne.s32.totalorder %s69, %s71
      %p75 = scmp.eq.s32.totalorder %s14, 0
      %p76 = por %p74, %p75
      %p77 = scmp.ne.s32.totalorder %s69, %s71
      %p78 = scmp.eq.s32.totalorder %s19, 1
      %p79 = por %p77, %p78
      %p80 = scmp.ne.s32.totalorder %s71, %s72
      %p81 = scmp.eq.s32.totalorder %s19, 0
      %p82 = por %p80, %p81
      %p83 = scmp.ne.s32.totalorder %s71, %s72
      %p84 = scmp.eq.s32.totalorder %s20, 1
      %p85 = por %p83, %p84
      %p87 = scmp.ne.s32.totalorder %s72, %s86
      %p88 = scmp.eq.s32.totalorder %s20, 0
      %p89 = por %p87, %p88
      %s91 = sadd.s32 %s90, 1
      %p94 = scmp.eq.s32.totalorder %s14, 1
      %p95 = scmp.ne.s32.totalorder %s90, %s92
      %p96 = scmp.eq.s32.totalorder %s14, 0
      %p97 = por %p95, %p96
      %p98 = scmp.ne.s32.totalorder %s90, %s92
      %p99 = scmp.eq.s32.totalorder %s19, 1
      %p100 = por %p98, %p99
      %p101 = scmp.ne.s32.totalorder %s92, %s93
      %p102 = scmp.eq.s32.totalorder %s19, 0
      %p103 = por %p101, %p102
      %p104 = scmp.ne.s32.totalorder %s92, %s93
      %p105 = scmp.eq.s32.totalorder %s20, 1
      %p106 = por %p104, %p105
      %p108 = scmp.ne.s32.totalorder %s93, %s107
      %p109 = scmp.eq.s32.totalorder %s20, 0
      %p110 = por %p108, %p109
      %s112 = sadd.s32 %s111, 1
      %p115 = scmp.eq.s32.totalorder %s14, 1
      %p116 = scmp.ne.s32.totalorder %s111, %s113
      %p117 = scmp.eq.s32.totalorder %s14, 0
      %p118 = por %p116, %p117
      %p119 = scmp.ne.s32.totalorder %s111, %s113
      %p120 = scmp.eq.s32.totalorder %s19, 1
      %p121 = por %p119, %p120
      %p122 = scmp.ne.s32.totalorder %s113, %s114
      %p123 = scmp.eq.s32.totalorder %s19, 0
      %p124 = por %p122, %p123
      %p125 = scmp.ne.s32.totalorder %s113, %s114
      %p126 = scmp.eq.s32.totalorder %s20, 1
      %p127 = por %p125, %p126
      %p129 = scmp.ne.s32.totalorder %s114, %s128
      %p130 = scmp.eq.s32.totalorder %s20, 0
      %p131 = por %p129, %p130
      %s133 = sadd.s32 %s132, 1
      %p136 = scmp.eq.s32.totalorder %s14, 1
      %p137 = scmp.ne.s32.totalorder %s132, %s134
      %p138 = scmp.eq.s32.totalorder %s14, 0
      %p139 = por %p137, %p138
      %p140 = scmp.ne.s32.totalorder %s132, %s134
      %p141 = scmp.eq.s32.totalorder %s19, 1
      %p142 = por %p140, %p141
      %p143 = scmp.ne.s32.totalorder %s134, %s135
      %p144 = scmp.eq.s32.totalorder %s19, 0
      %p145 = por %p143, %p144
      %p146 = scmp.ne.s32.totalorder %s134, %s135
      %p147 = scmp.eq.s32.totalorder %s20, 1
      %p148 = por %p146, %p147
      %p150 = scmp.ne.s32.totalorder %s135, %s149
      %p151 = scmp.eq.s32.totalorder %s20, 0
      %p152 = por %p150, %p151
      %s154 = sadd.s32 %s153, 1
      %p157 = scmp.eq.s32.totalorder %s14, 1
      %p158 = scmp.ne.s32.totalorder %s153, %s155
      %p159 = scmp.eq.s32.totalorder %s14, 0
      %p160 = por %p158, %p159
      %p161 = scmp.ne.s32.totalorder %s153, %s155
      %p162 = scmp.eq.s32.totalorder %s19, 1
      %p163 = por %p161, %p162
      %p164 = scmp.ne.s32.totalorder %s155, %s156
      %p165 = scmp.eq.s32.totalorder %s19, 0
      %p166 = por %p164, %p165
      %p167 = scmp.ne.s32.totalorder %s155, %s156
      %p168 = scmp.eq.s32.totalorder %s20, 1
      %p169 = por %p167, %p168
      %p171 = scmp.ne.s32.totalorder %s156, %s170
      %p172 = scmp.eq.s32.totalorder %s20, 0
      %p173 = por %p171, %p172
      %s174 = ssub.s32 %s14, %s21
      %p175 = scmp.eq.s32.totalorder %s174, 0
      %s177 = sadd.s32 %s176, 1
      %s178 = scalar_select %p175, %s176, %s177
      %p181 = pneg %p175
      %p182 = scmp.eq.s32.totalorder %s14, 1
      %p183 = por %p181, %p182
      %p184 = scmp.ne.s32.totalorder %s176, %s179
      %p185 = scmp.eq.s32.totalorder %s14, 0
      %p186 = por %p184, %p185
      %p187 = scmp.ne.s32.totalorder %s176, %s179
      %p188 = scmp.eq.s32.totalorder %s19, 1
      %p189 = por %p187, %p188
      %p190 = scmp.ne.s32.totalorder %s179, %s180
      %p191 = scmp.eq.s32.totalorder %s19, 0
      %p192 = por %p190, %p191
      %p193 = scmp.ne.s32.totalorder %s179, %s180
      %p194 = scmp.eq.s32.totalorder %s20, 1
      %p195 = por %p193, %p194
      %p197 = scmp.ne.s32.totalorder %s180, %s196
      %p198 = scmp.eq.s32.totalorder %s20, 0
      %p199 = por %p197, %p198
      %p200 = scmp.le.s32.totalorder 1, %s14
      %p201 = scmp.lt.s32.totalorder %s14, 3
      %p202 = pnand %p200, %p201
      %p203 = pneg %p202
      // Predicated region
      $region9: #{dnn_regressor_forward.1} parent=5 // pred_check
        _
      $region10: #{dnn_regressor_forward.1} parent=5 // pred_check_branch
        %205 = sbr.rel (%p202) target = $region12
      $region11: #{dnn_regressor_forward.1} parent=5 // pred_region
        %s206 = ssub.s32 %s14, 1
        // Predicated region
        $region13: #{dnn_regressor_forward.1} parent=11 // pred_check
          %p207 = pneg %p61
        $region14: #{dnn_regressor_forward.1} parent=11 // pred_check_branch
          %209 = sbr.rel (%p207) target = $region16
        $region15: #{dnn_regressor_forward.1} parent=11 // pred_region
          _
        $region16: #{dnn_regressor_forward.1} parent=11 // pred_fallthru
          _
        // Predicated region
        $region17: #{dnn_regressor_forward.1} parent=11 // pred_check
          %p210 = pneg %p82
        $region18: #{dnn_regressor_forward.1} parent=11 // pred_check_branch
          %212 = sbr.rel (%p210) target = $region20
        $region19: #{dnn_regressor_forward.1} parent=11 // pred_region
          _
        $region20: #{dnn_regressor_forward.1} parent=11 // pred_fallthru
          _
        // Predicated region
        $region21: #{dnn_regressor_forward.1} parent=11 // pred_check
          %p213 = pneg %p103
        $region22: #{dnn_regressor_forward.1} parent=11 // pred_check_branch
          %215 = sbr.rel (%p213) target = $region24
        $region23: #{dnn_regressor_forward.1} parent=11 // pred_region
          _
        $region24: #{dnn_regressor_forward.1} parent=11 // pred_fallthru
          _
        // Predicated region
        $region25: #{dnn_regressor_forward.1} parent=11 // pred_check
          %p216 = pneg %p124
        $region26: #{dnn_regressor_forward.1} parent=11 // pred_check_branch
          %218 = sbr.rel (%p216) target = $region28
        $region27: #{dnn_regressor_forward.1} parent=11 // pred_region
          _
        $region28: #{dnn_regressor_forward.1} parent=11 // pred_fallthru
          _
        // Predicated region
        $region29: #{dnn_regressor_forward.1} parent=11 // pred_check
          %p219 = pneg %p145
        $region30: #{dnn_regressor_forward.1} parent=11 // pred_check_branch
          %221 = sbr.rel (%p219) target = $region32
        $region31: #{dnn_regressor_forward.1} parent=11 // pred_region
          _
        $region32: #{dnn_regressor_forward.1} parent=11 // pred_fallthru
          _
        // Predicated region
        $region33: #{dnn_regressor_forward.1} parent=11 // pred_check
          %p222 = pneg %p166
        $region34: #{dnn_regressor_forward.1} parent=11 // pred_check_branch
          %224 = sbr.rel (%p222) target = $region36
        $region35: #{dnn_regressor_forward.1} parent=11 // pred_region
          _
        $region36: #{dnn_regressor_forward.1} parent=11 // pred_fallthru
          _
      $region12: #{dnn_regressor_forward.1} parent=5 // pred_fallthru
        _
      %p225 = scmp.lt.s32.totalorder %s14, 2
      // Predicated region
      $region37: #{dnn_regressor_forward.1} parent=5 // pred_check
        %p226 = pneg %p225
      $region38: #{dnn_regressor_forward.1} parent=5 // pred_check_branch
        %228 = sbr.rel (%p226) target = $region40
      $region39: #{dnn_regressor_forward.1} parent=5 // pred_region
        // Predicated region
        $region41: #{dnn_regressor_forward.1} parent=39 // pred_check
          %p229 = pneg %p34
        $region42: #{dnn_regressor_forward.1} parent=39 // pred_check_branch
          %231 = sbr.rel (%p229) target = $region44
        $region43: #{dnn_regressor_forward.1} parent=39 // pred_region
          %s232 = smul.u32 16, %s14
          %s233 = ssub.s32 25, %s232
          %p234 = scmp.lt.s32.totalorder %s233, 16
          %s235 = scalar_select %p234, %s233, 16
          %s236 = smul.u32 128, %s235
          %p237 = scmp.lt.s32.totalorder %s232, 24
          %s238 = scalar_select %p237, %s232, 24
          %s239 = smul.addr %s238, 8
          %s240 = scalar_lea.vmem %s0, %s239
          %s241 = smul.u32 16, %s14
          %s242 = ssub.s32 25, %s241
          %p243 = scmp.lt.s32.totalorder %s242, 16
          %s244 = scalar_select %p243, %s242, 16
          %s245 = smul.u32 128, %s244
        $region44: #{dnn_regressor_forward.1} parent=39 // pred_fallthru
          _
      $region40: #{dnn_regressor_forward.1} parent=5 // pred_fallthru
        _
      %p246 = scmp.le.s32.totalorder 1, %s14
      %p247 = scmp.lt.s32.totalorder %s14, 3
      %p248 = pnand %p246, %p247
      %p249 = pneg %p248
      // Predicated region
      $region45: #{dnn_regressor_forward.1} parent=5 // pred_check
        _
      $region46: #{dnn_regressor_forward.1} parent=5 // pred_check_branch
        %251 = sbr.rel (%p248) target = $region48
      $region47: #{dnn_regressor_forward.1} parent=5 // pred_region
        %s252 = ssub.s32 %s14, 1
        %s253 = smul.u32 16, %s19
        %s254 = ssub.s32 25, %s253
        %p255 = scmp.lt.s32.totalorder %s254, 16
        %s256 = scalar_select %p255, %s254, 16
        %s257 = smul.u32 128, %s256
        %p258 = scmp.lt.s32.totalorder %s253, 24
        %s259 = scalar_select %p258, %s253, 24
        %s260 = smul.addr %s259, 8
        %s261 = scalar_lea.vmem %s0, %s260
        %p262 = pneg %p40
        %p263 = pneg %p37
        %p264 = pneg %p61
        %p265 = pneg %p58
        %p266 = pneg %p82
        %p267 = pneg %p79
        %p268 = pneg %p103
        %p269 = pneg %p100
        %p270 = pneg %p124
        %p271 = pneg %p121
        %p272 = pneg %p145
        %p273 = pneg %p142
        %p274 = pneg %p166
        %p275 = pneg %p163
        %p276 = pneg %p192
        %p277 = pneg %p189
        %s278 = sand.u32 %s179, 1
        %s279 = sand.u32 %s179, 1
        %s280 = smul.addr %s279, 128
        %s281 = scalar_lea.vmem [#allocation3], %s280
        %s282 = smul.u32 16, %s19
        %s283 = ssub.s32 25, %s282
        %p284 = scmp.lt.s32.totalorder %s283, 16
        %s285 = scalar_select %p284, %s283, 16
        %s286 = smul.u32 128, %s285
        %p287 = scmp.lt.s32.totalorder %s282, 24
        %s288 = scalar_select %p287, %s282, 24
        %s289 = smul.addr %s288, 8
        %s290 = scalar_lea.vmem %s0, %s289
        %s291 = smul.u32 16, %s19
        %s292 = ssub.s32 25, %s291
        %p293 = scmp.lt.s32.totalorder %s292, 16
        %s294 = scalar_select %p293, %s292, 16
        %s295 = smul.u32 128, %s294
        %s296 = smul.u32 16, %s19
        %s297 = ssub.s32 25, %s296
        %p298 = scmp.lt.s32.totalorder %s297, 16
        %s299 = scalar_select %p298, %s297, 16
        %s300 = smul.u32 128, %s299
        %v301 = vld [vmem:[%s290] sm:$0xff]
        %v302 = vld [vmem:[%s290 + $0x8] sm:$0xff]
        %v303 = vld [vmem:[%s290 + $0x10] sm:$0xff]
        %v304 = vld [vmem:[%s290 + $0x18] sm:$0xff]
        %v305 = vld [vmem:[%s290 + $0x20] sm:$0xff]
        %v306 = vld [vmem:[%s290 + $0x28] sm:$0xff]
        %v307 = vld [vmem:[%s290 + $0x30] sm:$0xff]
        %v308 = vld [vmem:[%s290 + $0x38] sm:$0xff]
        %v309 = vld [vmem:[%s290 + $0x40] sm:$0xff]
        %v310 = vld [vmem:[%s290 + $0x48] sm:$0xff]
        %v311 = vld [vmem:[%s290 + $0x50] sm:$0xff]
        %v312 = vld [vmem:[%s290 + $0x58] sm:$0xff]
        %v313 = vld [vmem:[%s290 + $0x60] sm:$0xff]
        %v314 = vld [vmem:[%s290 + $0x68] sm:$0xff]
        %v315 = vld [vmem:[%s290 + $0x70] sm:$0xff]
        %v316 = vld [vmem:[%s290 + $0x78] sm:$0xff]
        %v317 = vld [vmem:[%s1] sm:$0xff]
        %v318 = vld [vmem:[%s2] sm:$0x1]
        %v320 = vlaneseq
        %v321 = vshrl.u32 %v320, 7
        %v322 = vsub.s32 0, %v321
        %v323 = vrot.slane %v318, %v322
        %vm325 = vcmask 64512
        %v327 = vsel %vm325, %v301, 0
        %v330 = vsel %vm325, %v302, 0
        %v333 = vsel %vm325, %v303, 0
        %v336 = vsel %vm325, %v304, 0
        %v339 = vsel %vm325, %v305, 0
        %v342 = vsel %vm325, %v306, 0
        %v345 = vsel %vm325, %v307, 0
        %v348 = vsel %vm325, %v308, 0
        %v351 = vsel %vm325, %v309, 0
        %v354 = vsel %vm325, %v310, 0
        %v357 = vsel %vm325, %v311, 0
        %v360 = vsel %vm325, %v312, 0
        %v363 = vsel %vm325, %v313, 0
        %v366 = vsel %vm325, %v314, 0
        %v369 = vsel %vm325, %v315, 0
        %v372 = vsel %vm325, %v316, 0
        %374 = vmatprep.subr.mxu0 0.0
        %375 = vmatpush1.msra.mxu0 %v317
        %376 = vmatprep.subr.mxu0 0.0
        %377 = vmatpush1.msra.mxu0 0.0
        %378 = vmatprep.subr.mxu0 0.0
        %379 = vmatpush1.msra.mxu0 0.0
        %380 = vmatprep.subr.mxu0 0.0
        %381 = vmatpush1.msra.mxu0 0.0
        %382 = vmatprep.subr.mxu0 0.0
        %383 = vmatpush1.msra.mxu0 0.0
        %384 = vmatprep.subr.mxu0 0.0
        %385 = vmatpush1.msra.mxu0 0.0
        %386 = vmatprep.subr.mxu0 0.0
        %387 = vmatpush1.msra.mxu0 0.0
        %388 = vmatprep.subr.mxu0 0.0
        %389 = vmatpush1.msra.mxu0 0.0
        %390 = vmatprep.subr.mxu0 0.0
        %391 = vmatpush1.msra.mxu0 0.0
        %392 = vmatprep.subr.mxu0 0.0
        %393 = vmatpush1.msra.mxu0 0.0
        %394 = vmatprep.subr.mxu0 0.0
        %395 = vmatpush1.msra.mxu0 0.0
        %396 = vmatprep.subr.mxu0 0.0
        %397 = vmatpush1.msra.mxu0 0.0
        %398 = vmatprep.subr.mxu0 0.0
        %399 = vmatpush1.msra.mxu0 0.0
        %400 = vmatprep.subr.mxu0 0.0
        %401 = vmatpush1.msra.mxu0 0.0
        %402 = vmatprep.subr.mxu0 0.0
        %403 = vmatpush1.msra.mxu0 0.0
        %404 = vmatprep.subr.mxu0 0.0
        %405 = vmatpush1.msra.mxu0 0.0
        %406 = vmatprep.subr.mxu0 0.0
        %407 = vmatpush1.msra.mxu0 0.0
        %408 = vmatprep.subr.mxu0 0.0
        %409 = vmatpush1.msra.mxu0 0.0
        %410 = vmatprep.subr.mxu0 0.0
        %411 = vmatpush1.msra.mxu0 0.0
        %412 = vmatprep.subr.mxu0 0.0
        %413 = vmatpush1.msra.mxu0 0.0
        %414 = vmatprep.subr.mxu0 0.0
        %415 = vmatpush1.msra.mxu0 0.0
        %416 = vmatprep.subr.mxu0 0.0
        %417 = vmatpush1.msra.mxu0 0.0
        %418 = vmatprep.subr.mxu0 0.0
        %419 = vmatpush1.msra.mxu0 0.0
        %420 = vmatprep.subr.mxu0 0.0
        %421 = vmatpush1.msra.mxu0 0.0
        %422 = vmatprep.subr.mxu0 0.0
        %423 = vmatpush1.msra.mxu0 0.0
        %424 = vmatprep.subr.mxu0 0.0
        %425 = vmatpush1.msra.mxu0 0.0
        %426 = vmatprep.subr.mxu0 0.0
        %427 = vmatpush1.msra.mxu0 0.0
        %428 = vmatprep.subr.mxu0 0.0
        %429 = vmatpush1.msra.mxu0 0.0
        %430 = vmatprep.subr.mxu0 0.0
        %431 = vmatpush1.msra.mxu0 0.0
        %432 = vmatprep.subr.mxu0 0.0
        %433 = vmatpush1.msra.mxu0 0.0
        %434 = vmatprep.subr.mxu0 0.0
        %435 = vmatpush1.msra.mxu0 0.0
        %436 = vmatprep.subr.mxu0 0.0
        %437 = vmatpush1.msra.mxu0 0.0
        %438 = vmatprep.mubr.f32.mxu0 0.0
        %439 = vmatmul.mubr.f32.gmra.mrb[0].mxu0 %v327
        %v440 = vpop.f32.mrb[0].mxu0
        %v441 = vadd.f32 %v323, %v440
        %v442 = vpop.f32.mrb[0].mxu0
        %443 = vmatprep.mubr.f32.mxu0 0.0
        %444 = vmatmul.mubr.f32.gmra.mrb[0].mxu0 %v330
        %v445 = vpop.f32.mrb[0].mxu0
        %v446 = vadd.f32 %v323, %v445
        %v447 = vpop.f32.mrb[0].mxu0
        %448 = vmatprep.mubr.f32.mxu0 0.0
        %449 = vmatmul.mubr.f32.gmra.mrb[0].mxu0 %v333
        %v450 = vpop.f32.mrb[0].mxu0
        %v451 = vadd.f32 %v323, %v450
        %v452 = vpop.f32.mrb[0].mxu0
        %453 = vmatprep.mubr.f32.mxu0 0.0
        %454 = vmatmul.mubr.f32.gmra.mrb[0].mxu0 %v336
        %v455 = vpop.f32.mrb[0].mxu0
        %v456 = vadd.f32 %v323, %v455
        %v457 = vpop.f32.mrb[0].mxu0
        %458 = vmatprep.mubr.f32.mxu0 0.0
        %459 = vmatmul.mubr.f32.gmra.mrb[0].mxu0 %v339
        %v460 = vpop.f32.mrb[0].mxu0
        %v461 = vadd.f32 %v323, %v460
        %v462 = vpop.f32.mrb[0].mxu0
        %463 = vmatprep.mubr.f32.mxu0 0.0
        %464 = vmatmul.mubr.f32.gmra.mrb[0].mxu0 %v342
        %v465 = vpop.f32.mrb[0].mxu0
        %v466 = vadd.f32 %v323, %v465
        %v467 = vpop.f32.mrb[0].mxu0
        %468 = vmatprep.mubr.f32.mxu0 0.0
        %469 = vmatmul.mubr.f32.gmra.mrb[0].mxu0 %v345
        %v470 = vpop.f32.mrb[0].mxu0
        %v471 = vadd.f32 %v323, %v470
        %v472 = vpop.f32.mrb[0].mxu0
        %473 = vmatprep.mubr.f32.mxu0 0.0
        %474 = vmatmul.mubr.f32.gmra.mrb[0].mxu0 %v348
        %v475 = vpop.f32.mrb[0].mxu0
        %v476 = vadd.f32 %v323, %v475
        %v477 = vpop.f32.mrb[0].mxu0
        %478 = vmatprep.mubr.f32.mxu0 0.0
        %479 = vmatmul.mubr.f32.gmra.mrb[0].mxu0 %v351
        %v480 = vpop.f32.mrb[0].mxu0
        %v481 = vadd.f32 %v323, %v480
        %v482 = vpop.f32.mrb[0].mxu0
        %483 = vmatprep.mubr.f32.mxu0 0.0
        %484 = vmatmul.mubr.f32.gmra.mrb[0].mxu0 %v354
        %v485 = vpop.f32.mrb[0].mxu0
        %v486 = vadd.f32 %v323, %v485
        %v487 = vpop.f32.mrb[0].mxu0
        %488 = vmatprep.mubr.f32.mxu0 0.0
        %489 = vmatmul.mubr.f32.gmra.mrb[0].mxu0 %v357
        %v490 = vpop.f32.mrb[0].mxu0
        %v491 = vadd.f32 %v323, %v490
        %v492 = vpop.f32.mrb[0].mxu0
        %493 = vmatprep.mubr.f32.mxu0 0.0
        %494 = vmatmul.mubr.f32.gmra.mrb[0].mxu0 %v360
        %v495 = vpop.f32.mrb[0].mxu0
        %v496 = vadd.f32 %v323, %v495
        %v497 = vpop.f32.mrb[0].mxu0
        %498 = vmatprep.mubr.f32.mxu0 0.0
        %499 = vmatmul.mubr.f32.gmra.mrb[0].mxu0 %v363
        %v500 = vpop.f32.mrb[0].mxu0
        %v501 = vadd.f32 %v323, %v500
        %v502 = vpop.f32.mrb[0].mxu0
        %503 = vmatprep.mubr.f32.mxu0 0.0
        %504 = vmatmul.mubr.f32.gmra.mrb[0].mxu0 %v366
        %v505 = vpop.f32.mrb[0].mxu0
        %v506 = vadd.f32 %v323, %v505
        %v507 = vpop.f32.mrb[0].mxu0
        %508 = vmatprep.mubr.f32.mxu0 0.0
        %509 = vmatmul.mubr.f32.gmra.mrb[0].mxu0 %v369
        %v510 = vpop.f32.mrb[0].mxu0
        %v511 = vadd.f32 %v323, %v510
        %v512 = vpop.f32.mrb[0].mxu0
        %513 = vmatprep.mubr.f32.mxu0 0.0
        %514 = vmatmul.mubr.f32.gmra.mrb[0].mxu0 %v372
        %v515 = vpop.f32.mrb[0].mxu0
        %v516 = vadd.f32 %v323, %v515
        %v517 = vpop.f32.mrb[0].mxu0
        %518 = vdwg.mxu0
        %v519 = vmax.f32 %v441, 0.0
        %v520 = vmax.f32 %v446, 0.0
        %v521 = vmax.f32 %v451, 0.0
        %v522 = vmax.f32 %v456, 0.0
        %v523 = vmax.f32 %v461, 0.0
        %v524 = vmax.f32 %v466, 0.0
        %v525 = vmax.f32 %v471, 0.0
        %v526 = vmax.f32 %v476, 0.0
        %v527 = vmax.f32 %v481, 0.0
        %v528 = vmax.f32 %v486, 0.0
        %v529 = vmax.f32 %v491, 0.0
        %v530 = vmax.f32 %v496, 0.0
        %v531 = vmax.f32 %v501, 0.0
        %v532 = vmax.f32 %v506, 0.0
        %v533 = vmax.f32 %v511, 0.0
        %v534 = vmax.f32 %v516, 0.0
        %v535 = vld [vmem:[%s3] sm:$0xff]
        %v536 = vld [vmem:[%s3 + $0x8] sm:$0xff]
        %v537 = vld [vmem:[%s3 + $0x10] sm:$0xff]
        %v538 = vld [vmem:[%s3 + $0x18] sm:$0xff]
        %v539 = vld [vmem:[%s3 + $0x20] sm:$0xff]
        %v540 = vld [vmem:[%s3 + $0x28] sm:$0xff]
        %v541 = vld [vmem:[%s3 + $0x30] sm:$0xff]
        %v542 = vld [vmem:[%s3 + $0x38] sm:$0xff]
        %v543 = vld [vmem:[%s3 + $0x40] sm:$0xff]
        %v544 = vld [vmem:[%s3 + $0x48] sm:$0xff]
        %v545 = vld [vmem:[%s3 + $0x50] sm:$0xff]
        %v546 = vld [vmem:[%s3 + $0x58] sm:$0xff]
        %v547 = vld [vmem:[%s3 + $0x60] sm:$0xff]
        %v548 = vld [vmem:[%s3 + $0x68] sm:$0xff]
        %v549 = vld [vmem:[%s3 + $0x70] sm:$0xff]
        %v550 = vld [vmem:[%s3 + $0x78] sm:$0xff]
        %v551 = vld [vmem:[%s4] sm:$0x1]
        %v553 = vlaneseq
        %v554 = vshrl.u32 %v553, 7
        %v555 = vsub.s32 0, %v554
        %v556 = vrot.slane %v551, %v555
        %558 = vmatprep.subr.mxu0 0.0
        %559 = vmatpush1.msra.mxu0 %v535
        %560 = vmatprep.subr.mxu0 0.0
        %561 = vmatpush1.msra.mxu0 %v536
        %562 = vmatprep.subr.mxu0 0.0
        %563 = vmatpush1.msra.mxu0 %v537
        %564 = vmatprep.subr.mxu0 0.0
        %565 = vmatpush1.msra.mxu0 %v538
        %566 = vmatprep.subr.mxu0 0.0
        %567 = vmatpush1.msra.mxu0 %v539
        %568 = vmatprep.subr.mxu0 0.0
        %569 = vmatpush1.msra.mxu0 %v540
        %570 = vmatprep.subr.mxu0 0.0
        %571 = vmatpush1.msra.mxu0 %v541
        %572 = vmatprep.subr.mxu0 0.0
        %573 = vmatpush1.msra.mxu0 %v542
        %574 = vmatprep.subr.mxu0 0.0
        %575 = vmatpush1.msra.mxu0 %v543
        %576 = vmatprep.subr.mxu0 0.0
        %577 = vmatpush1.msra.mxu0 %v544
        %578 = vmatprep.subr.mxu0 0.0
        %579 = vmatpush1.msra.mxu0 %v545
        %580 = vmatprep.subr.mxu0 0.0
        %581 = vmatpush1.msra.mxu0 %v546
        %582 = vmatprep.subr.mxu0 0.0
        %583 = vmatpush1.msra.mxu0 %v547
        %584 = vmatprep.subr.mxu0 0.0
        %585 = vmatpush1.msra.mxu0 %v548
        %586 = vmatprep.subr.mxu0 0.0
        %587 = vmatpush1.msra.mxu0 %v549
        %588 = vmatprep.subr.mxu0 0.0
        %589 = vmatpush1.msra.mxu0 %v550
        %590 = vmatprep.subr.mxu0 0.0
        %591 = vmatpush1.msra.mxu0 0.0
        %592 = vmatprep.subr.mxu0 0.0
        %593 = vmatpush1.msra.mxu0 0.0
        %594 = vmatprep.subr.mxu0 0.0
        %595 = vmatpush1.msra.mxu0 0.0
        %596 = vmatprep.subr.mxu0 0.0
        %597 = vmatpush1.msra.mxu0 0.0
        %598 = vmatprep.subr.mxu0 0.0
        %599 = vmatpush1.msra.mxu0 0.0
        %600 = vmatprep.subr.mxu0 0.0
        %601 = vmatpush1.msra.mxu0 0.0
        %602 = vmatprep.subr.mxu0 0.0
        %603 = vmatpush1.msra.mxu0 0.0
        %604 = vmatprep.subr.mxu0 0.0
        %605 = vmatpush1.msra.mxu0 0.0
        %606 = vmatprep.subr.mxu0 0.0
        %607 = vmatpush1.msra.mxu0 0.0
        %608 = vmatprep.subr.mxu0 0.0
        %609 = vmatpush1.msra.mxu0 0.0
        %610 = vmatprep.subr.mxu0 0.0
        %611 = vmatpush1.msra.mxu0 0.0
        %612 = vmatprep.subr.mxu0 0.0
        %613 = vmatpush1.msra.mxu0 0.0
        %614 = vmatprep.subr.mxu0 0.0
        %615 = vmatpush1.msra.mxu0 0.0
        %616 = vmatprep.subr.mxu0 0.0
        %617 = vmatpush1.msra.mxu0 0.0
        %618 = vmatprep.subr.mxu0 0.0
        %619 = vmatpush1.msra.mxu0 0.0
        %620 = vmatprep.subr.mxu0 0.0
        %621 = vmatpush1.msra.mxu0 0.0
        %622 = vmatprep.mubr.f32.mxu0 0.0
        %623 = vmatmul.mubr.f32.gmra.mrb[0].mxu0 %v519
        %v624 = vpop.f32.mrb[0].mxu0
        %v625 = vadd.f32 %v556, %v624
        %v626 = vpop.f32.mrb[0].mxu0
        %627 = vmatprep.mubr.f32.mxu0 0.0
        %628 = vmatmul.mubr.f32.gmra.mrb[0].mxu0 %v520
        %v629 = vpop.f32.mrb[0].mxu0
        %v630 = vadd.f32 %v556, %v629
        %v631 = vpop.f32.mrb[0].mxu0
        %632 = vmatprep.mubr.f32.mxu0 0.0
        %633 = vmatmul.mubr.f32.gmra.mrb[0].mxu0 %v521
        %v634 = vpop.f32.mrb[0].mxu0
        %v635 = vadd.f32 %v556, %v634
        %v636 = vpop.f32.mrb[0].mxu0
        %637 = vmatprep.mubr.f32.mxu0 0.0
        %638 = vmatmul.mubr.f32.gmra.mrb[0].mxu0 %v522
        %v639 = vpop.f32.mrb[0].mxu0
        %v640 = vadd.f32 %v556, %v639
        %v641 = vpop.f32.mrb[0].mxu0
        %642 = vmatprep.mubr.f32.mxu0 0.0
        %643 = vmatmul.mubr.f32.gmra.mrb[0].mxu0 %v523
        %v644 = vpop.f32.mrb[0].mxu0
        %v645 = vadd.f32 %v556, %v644
        %v646 = vpop.f32.mrb[0].mxu0
        %647 = vmatprep.mubr.f32.mxu0 0.0
        %648 = vmatmul.mubr.f32.gmra.mrb[0].mxu0 %v524
        %v649 = vpop.f32.mrb[0].mxu0
        %v650 = vadd.f32 %v556, %v649
        %v651 = vpop.f32.mrb[0].mxu0
        %652 = vmatprep.mubr.f32.mxu0 0.0
        %653 = vmatmul.mubr.f32.gmra.mrb[0].mxu0 %v525
        %v654 = vpop.f32.mrb[0].mxu0
        %v655 = vadd.f32 %v556, %v654
        %v656 = vpop.f32.mrb[0].mxu0
        %657 = vmatprep.mubr.f32.mxu0 0.0
        %658 = vmatmul.mubr.f32.gmra.mrb[0].mxu0 %v526
        %v659 = vpop.f32.mrb[0].mxu0
        %v660 = vadd.f32 %v556, %v659
        %v661 = vpop.f32.mrb[0].mxu0
        %662 = vmatprep.mubr.f32.mxu0 0.0
        %663 = vmatmul.mubr.f32.gmra.mrb[0].mxu0 %v527
        %v664 = vpop.f32.mrb[0].mxu0
        %v665 = vadd.f32 %v556, %v664
        %v666 = vpop.f32.mrb[0].mxu0
        %667 = vmatprep.mubr.f32.mxu0 0.0
        %668 = vmatmul.mubr.f32.gmra.mrb[0].mxu0 %v528
        %v669 = vpop.f32.mrb[0].mxu0
        %v670 = vadd.f32 %v556, %v669
        %v671 = vpop.f32.mrb[0].mxu0
        %672 = vmatprep.mubr.f32.mxu0 0.0
        %673 = vmatmul.mubr.f32.gmra.mrb[0].mxu0 %v529
        %v674 = vpop.f32.mrb[0].mxu0
        %v675 = vadd.f32 %v556, %v674
        %v676 = vpop.f32.mrb[0].mxu0
        %677 = vmatprep.mubr.f32.mxu0 0.0
        %678 = vmatmul.mubr.f32.gmra.mrb[0].mxu0 %v530
        %v679 = vpop.f32.mrb[0].mxu0
        %v680 = vadd.f32 %v556, %v679
        %v681 = vpop.f32.mrb[0].mxu0
        %682 = vmatprep.mubr.f32.mxu0 0.0
        %683 = vmatmul.mubr.f32.gmra.mrb[0].mxu0 %v531
        %v684 = vpop.f32.mrb[0].mxu0
        %v685 = vadd.f32 %v556, %v684
        %v686 = vpop.f32.mrb[0].mxu0
        %687 = vmatprep.mubr.f32.mxu0 0.0
        %688 = vmatmul.mubr.f32.gmra.mrb[0].mxu0 %v532
        %v689 = vpop.f32.mrb[0].mxu0
        %v690 = vadd.f32 %v556, %v689
        %v691 = vpop.f32.mrb[0].mxu0
        %692 = vmatprep.mubr.f32.mxu0 0.0
        %693 = vmatmul.mubr.f32.gmra.mrb[0].mxu0 %v533
        %v694 = vpop.f32.mrb[0].mxu0
        %v695 = vadd.f32 %v556, %v694
        %v696 = vpop.f32.mrb[0].mxu0
        %697 = vmatprep.mubr.f32.mxu0 0.0
        %698 = vmatmul.mubr.f32.gmra.mrb[0].mxu0 %v534
        %v699 = vpop.f32.mrb[0].mxu0
        %v700 = vadd.f32 %v556, %v699
        %v701 = vpop.f32.mrb[0].mxu0
        %702 = vdwg.mxu0
        %v703 = vmax.f32 %v625, 0.0
        %v704 = vmax.f32 %v630, 0.0
        %v705 = vmax.f32 %v635, 0.0
        %v706 = vmax.f32 %v640, 0.0
        %v707 = vmax.f32 %v645, 0.0
        %v708 = vmax.f32 %v650, 0.0
        %v709 = vmax.f32 %v655, 0.0
        %v710 = vmax.f32 %v660, 0.0
        %v711 = vmax.f32 %v665, 0.0
        %v712 = vmax.f32 %v670, 0.0
        %v713 = vmax.f32 %v675, 0.0
        %v714 = vmax.f32 %v680, 0.0
        %v715 = vmax.f32 %v685, 0.0
        %v716 = vmax.f32 %v690, 0.0
        %v717 = vmax.f32 %v695, 0.0
        %v718 = vmax.f32 %v700, 0.0
        %v719 = vld [vmem:[%s5] sm:$0x1]
        %v721 = vlaneseq
        %v722 = vshrl.u32 %v721, 7
        %v723 = vsub.s32 0, %v722
        %v724 = vrot.slane %v719, %v723
        %v726 = vmul.f32 %v703, %v724
        %v727 = vmul.f32 %v704, %v724
        %v728 = vmul.f32 %v705, %v724
        %v729 = vmul.f32 %v706, %v724
        %v730 = vmul.f32 %v707, %v724
        %v731 = vmul.f32 %v708, %v724
        %v732 = vmul.f32 %v709, %v724
        %v733 = vmul.f32 %v710, %v724
        %v734 = vmul.f32 %v711, %v724
        %v735 = vmul.f32 %v712, %v724
        %v736 = vmul.f32 %v713, %v724
        %v737 = vmul.f32 %v714, %v724
        %v738 = vmul.f32 %v715, %v724
        %v739 = vmul.f32 %v716, %v724
        %v740 = vmul.f32 %v717, %v724
        %v741 = vmul.f32 %v718, %v724
        %742 = vadd.xlane.f32.xlu0 %v726
        %v743 = vpop.xlane.xlu0 %742
        %744 = vadd.xlane.f32.xlu0 %v727
        %v745 = vpop.xlane.xlu0 %744
        %746 = vadd.xlane.f32.xlu0 %v728
        %v747 = vpop.xlane.xlu0 %746
        %748 = vadd.xlane.f32.xlu0 %v729
        %v749 = vpop.xlane.xlu0 %748
        %750 = vadd.xlane.f32.xlu0 %v730
        %v751 = vpop.xlane.xlu0 %750
        %752 = vadd.xlane.f32.xlu0 %v731
        %v753 = vpop.xlane.xlu0 %752
        %754 = vadd.xlane.f32.xlu0 %v732
        %v755 = vpop.xlane.xlu0 %754
        %756 = vadd.xlane.f32.xlu0 %v733
        %v757 = vpop.xlane.xlu0 %756
        %758 = vadd.xlane.f32.xlu0 %v734
        %v759 = vpop.xlane.xlu0 %758
        %760 = vadd.xlane.f32.xlu0 %v735
        %v761 = vpop.xlane.xlu0 %760
        %762 = vadd.xlane.f32.xlu0 %v736
        %v763 = vpop.xlane.xlu0 %762
        %764 = vadd.xlane.f32.xlu0 %v737
        %v765 = vpop.xlane.xlu0 %764
        %766 = vadd.xlane.f32.xlu0 %v738
        %v767 = vpop.xlane.xlu0 %766
        %768 = vadd.xlane.f32.xlu0 %v739
        %v769 = vpop.xlane.xlu0 %768
        %770 = vadd.xlane.f32.xlu0 %v740
        %v771 = vpop.xlane.xlu0 %770
        %772 = vadd.xlane.f32.xlu0 %v741
        %v773 = vpop.xlane.xlu0 %772
        %s774 = sld [smem:[#allocation2]]
        %v775 = vstv %s774
        %v776 = vadd.f32 %v743, %v775
        %v777 = vadd.f32 %v745, %v775
        %v778 = vadd.f32 %v747, %v775
        %v779 = vadd.f32 %v749, %v775
        %v780 = vadd.f32 %v751, %v775
        %v781 = vadd.f32 %v753, %v775
        %v782 = vadd.f32 %v755, %v775
        %v783 = vadd.f32 %v757, %v775
        %v784 = vadd.f32 %v759, %v775
        %v785 = vadd.f32 %v761, %v775
        %v786 = vadd.f32 %v763, %v775
        %v787 = vadd.f32 %v765, %v775
        %v788 = vadd.f32 %v767, %v775
        %v789 = vadd.f32 %v769, %v775
        %v790 = vadd.f32 %v771, %v775
        %v791 = vadd.f32 %v773, %v775
        %vm792 = vcmask 7168
        %793 = vst.msk [vmem:[%s281] sm:$0xff] %vm792, %v776
        %794 = vst.msk [vmem:[%s281 + $0x8] sm:$0xff] %vm792, %v777
        %795 = vst.msk [vmem:[%s281 + $0x10] sm:$0xff] %vm792, %v778
        %796 = vst.msk [vmem:[%s281 + $0x18] sm:$0xff] %vm792, %v779
        %797 = vst.msk [vmem:[%s281 + $0x20] sm:$0xff] %vm792, %v780
        %798 = vst.msk [vmem:[%s281 + $0x28] sm:$0xff] %vm792, %v781
        %799 = vst.msk [vmem:[%s281 + $0x30] sm:$0xff] %vm792, %v782
        %800 = vst.msk [vmem:[%s281 + $0x38] sm:$0xff] %vm792, %v783
        %801 = vst.msk [vmem:[%s281 + $0x40] sm:$0xff] %vm792, %v784
        %802 = vst.msk [vmem:[%s281 + $0x48] sm:$0xff] %vm792, %v785
        %803 = vst.msk [vmem:[%s281 + $0x50] sm:$0xff] %vm792, %v786
        %804 = vst.msk [vmem:[%s281 + $0x58] sm:$0xff] %vm792, %v787
        %805 = vst.msk [vmem:[%s281 + $0x60] sm:$0xff] %vm792, %v788
        %806 = vst.msk [vmem:[%s281 + $0x68] sm:$0xff] %vm792, %v789
        %807 = vst.msk [vmem:[%s281 + $0x70] sm:$0xff] %vm792, %v790
        %808 = vst.msk [vmem:[%s281 + $0x78] sm:$0xff] %vm792, %v791
        %s809 = sand.u32 %s179, 1
        %s810 = sand.u32 %s179, 1
        %s811 = smul.addr %s810, 128
        %s812 = scalar_lea.vmem [#allocation3], %s811
        // Predicated region
        $region49: #{dnn_regressor_forward.1} parent=47 // pred_check
          %p813 = pneg %p189
        $region50: #{dnn_regressor_forward.1} parent=47 // pred_check_branch
          %815 = sbr.rel (%p813) target = $region52
        $region51: #{dnn_regressor_forward.1} parent=47 // pred_region
          %s816 = smul.u32 16, %s19
          %s817 = ssub.s32 25, %s816
          %p818 = scmp.lt.s32.totalorder %s817, 16
          %s819 = scalar_select %p818, %s817, 16
          %s820 = smul.u32 128, %s819
          %p821 = scmp.ne.s32.totalorder 0, %s820
          %s822 = smul.addr %s816, 8
          %s823 = scalar_lea.vmem %s7, %s822
          // Predicated region
          $region53: #{dnn_regressor_forward.1} parent=51 // pred_check
            %p824 = pneg %p821
          $region54: #{dnn_regressor_forward.1} parent=51 // pred_check_branch
            %826 = sbr.rel (%p824) target = $region56
          $region55: #{dnn_regressor_forward.1} parent=51 // pred_region
            // Predicated region
            $region57: #{dnn_regressor_forward.1} parent=55 // pred_check
              _
            $region58: #{dnn_regressor_forward.1} parent=55 // pred_check_branch
              %828 = sbr.rel (0) target = $region60
            $region59: #{dnn_regressor_forward.1} parent=55 // pred_region
              // Predicated region
              $region79: #{dnn_regressor_forward.1} parent=59 // pred_check
                _
              $region80: #{dnn_regressor_forward.1} parent=59 // pred_check_branch
                %907 = sbr.rel (0) target = $region82
              $region81: #{dnn_regressor_forward.1} parent=59 // pred_region
                %s908 = sshrl.u32 %s819, 4
                // While loop
                $region83: #{dnn_regressor_forward.1} parent=81 // loop_pre_header
                  _
                $region84: #{dnn_regressor_forward.1} parent=81 // loop_header
                  %s910 = sphi 0, %s912
                  %p911 = scmp.ge.s32.totalorder %s910, %s908
                  %s915 = sphi 0, %s952
                  %s916 = sphi %s812, %s955
                  %s917 = sphi %s823, %s956
                $region85: #{dnn_regressor_forward.1} parent=81 // loop_header_branch
                  %914 = sbr.rel (%p911) target = $region89
                $region86: #{dnn_regressor_forward.1} parent=81 // loop_body
                  %v918 = vld [vmem:[%s916] sm:$0xff]
                  %919 = vst [vmem:[%s917] sm:$0xff] %v918
                  %v920 = vld [vmem:[%s916 + $0x8] sm:$0xff]
                  %921 = vst [vmem:[%s917 + $0x8] sm:$0xff] %v920
                  %v922 = vld [vmem:[%s916 + $0x10] sm:$0xff]
                  %923 = vst [vmem:[%s917 + $0x10] sm:$0xff] %v922
                  %v924 = vld [vmem:[%s916 + $0x18] sm:$0xff]
                  %925 = vst [vmem:[%s917 + $0x18] sm:$0xff] %v924
                  %v926 = vld [vmem:[%s916 + $0x20] sm:$0xff]
                  %927 = vst [vmem:[%s917 + $0x20] sm:$0xff] %v926
                  %v928 = vld [vmem:[%s916 + $0x28] sm:$0xff]
                  %929 = vst [vmem:[%s917 + $0x28] sm:$0xff] %v928
                  %v930 = vld [vmem:[%s916 + $0x30] sm:$0xff]
                  %931 = vst [vmem:[%s917 + $0x30] sm:$0xff] %v930
                  %v932 = vld [vmem:[%s916 + $0x38] sm:$0xff]
                  %933 = vst [vmem:[%s917 + $0x38] sm:$0xff] %v932
                  %v934 = vld [vmem:[%s916 + $0x40] sm:$0xff]
                  %935 = vst [vmem:[%s917 + $0x40] sm:$0xff] %v934
                  %v936 = vld [vmem:[%s916 + $0x48] sm:$0xff]
                  %937 = vst [vmem:[%s917 + $0x48] sm:$0xff] %v936
                  %v938 = vld [vmem:[%s916 + $0x50] sm:$0xff]
                  %939 = vst [vmem:[%s917 + $0x50] sm:$0xff] %v938
                  %v940 = vld [vmem:[%s916 + $0x58] sm:$0xff]
                  %941 = vst [vmem:[%s917 + $0x58] sm:$0xff] %v940
                  %v942 = vld [vmem:[%s916 + $0x60] sm:$0xff]
                  %943 = vst [vmem:[%s917 + $0x60] sm:$0xff] %v942
                  %v944 = vld [vmem:[%s916 + $0x68] sm:$0xff]
                  %945 = vst [vmem:[%s917 + $0x68] sm:$0xff] %v944
                  %v946 = vld [vmem:[%s916 + $0x70] sm:$0xff]
                  %947 = vst [vmem:[%s917 + $0x70] sm:$0xff] %v946
                  %v948 = vld [vmem:[%s916 + $0x78] sm:$0xff]
                  %949 = vst [vmem:[%s917 + $0x78] sm:$0xff] %v948
                  %s950 = sadd.s32 1, %s915
                  %p951 = scmp.ge.s32.totalorder %s950, %s908
                  %s952 = scalar_select %p951, 0, %s950
                  %s953 = smul.u32 %s952, 128
                  %s954 = smul.u32 %s952, 128
                  %s955 = scalar_lea.vmem %s812, %s953 [#allocation3]
                  %s956 = scalar_lea.vmem %s823, %s954
                $region87: #{dnn_regressor_forward.1} parent=81 // loop_footer
                  %s912 = sadd.s32 %s910, 1
                $region88: #{dnn_regressor_forward.1} parent=81 // loop_footer_branch
                  %909 = sbr.rel target = $region84
                $region89: #{dnn_regressor_forward.1} parent=81 // loop_exit
                  _
                %s957 = sshrl.u32 %s819, 4
                %s958 = sand.u32 %s819, 15
                %s959 = smul.u32 %s957, 16
                %s960 = smul.u32 8, %s959
                %s961 = scalar_lea.vmem %s812, %s960 [#allocation3]
                %s962 = smul.u32 8, %s959
                %s963 = scalar_lea.vmem %s823, %s962
                // While loop
                $region90: #{dnn_regressor_forward.1} parent=81 // loop_pre_header
                  _
                $region91: #{dnn_regressor_forward.1} parent=81 // loop_header
                  %s965 = sphi 0, %s967
                  %p966 = scmp.ge.s32.totalorder %s965, %s958
                  %s970 = sphi 0, %s977
                  %s971 = sphi %s961, %s980
                  %s972 = sphi %s963, %s981
                $region92: #{dnn_regressor_forward.1} parent=81 // loop_header_branch
                  %969 = sbr.rel (%p966) target = $region96
                $region93: #{dnn_regressor_forward.1} parent=81 // loop_body
                  %v973 = vld [vmem:[%s971] sm:$0xff]
                  %974 = vst [vmem:[%s972] sm:$0xff] %v973
                  %s975 = sadd.s32 1, %s970
                  %p976 = scmp.ge.s32.totalorder %s975, %s958
                  %s977 = scalar_select %p976, 0, %s975
                  %s978 = smul.u32 %s977, 8
                  %s979 = smul.u32 %s977, 8
                  %s980 = scalar_lea.vmem %s961, %s978 [#allocation3]
                  %s981 = scalar_lea.vmem %s963, %s979
                $region94: #{dnn_regressor_forward.1} parent=81 // loop_footer
                  %s967 = sadd.s32 %s965, 1
                $region95: #{dnn_regressor_forward.1} parent=81 // loop_footer_branch
                  %964 = sbr.rel target = $region91
                $region96: #{dnn_regressor_forward.1} parent=81 // loop_exit
                  _
              $region82: #{dnn_regressor_forward.1} parent=59 // pred_fallthru
                _
              // Predicated region
              $region97: #{dnn_regressor_forward.1} parent=59 // pred_check
                _
              $region98: #{dnn_regressor_forward.1} parent=59 // pred_check_branch
                %983 = sbr.rel target = $region100
              $region99: #{dnn_regressor_forward.1} parent=59 // pred_region
                _
              $region100: #{dnn_regressor_forward.1} parent=59 // pred_fallthru
                _
            $region60: #{dnn_regressor_forward.1} parent=55 // pred_fallthru
              _
            // Predicated region
            $region61: #{dnn_regressor_forward.1} parent=55 // pred_check
              _
            $region62: #{dnn_regressor_forward.1} parent=55 // pred_check_branch
              %830 = sbr.rel target = $region64
            $region63: #{dnn_regressor_forward.1} parent=55 // pred_region
              %s832 = sshrl.u32 %s819, 4
              // While loop
              $region65: #{dnn_regressor_forward.1} parent=63 // loop_pre_header
                _
              $region66: #{dnn_regressor_forward.1} parent=63 // loop_header
                %s834 = sphi 0, %s836
                %p835 = scmp.ge.s32.totalorder %s834, %s832
                %s839 = sphi 0, %s876
                %s840 = sphi %s812, %s879
                %s841 = sphi %s823, %s880
              $region67: #{dnn_regressor_forward.1} parent=63 // loop_header_branch
                %838 = sbr.rel (%p835) target = $region71
              $region68: #{dnn_regressor_forward.1} parent=63 // loop_body
                %v842 = vld [vmem:[%s840] sm:$0xff]
                %843 = vst [vmem:[%s841] sm:$0xff] %v842
                %v844 = vld [vmem:[%s840 + $0x8] sm:$0xff]
                %845 = vst [vmem:[%s841 + $0x8] sm:$0xff] %v844
                %v846 = vld [vmem:[%s840 + $0x10] sm:$0xff]
                %847 = vst [vmem:[%s841 + $0x10] sm:$0xff] %v846
                %v848 = vld [vmem:[%s840 + $0x18] sm:$0xff]
                %849 = vst [vmem:[%s841 + $0x18] sm:$0xff] %v848
                %v850 = vld [vmem:[%s840 + $0x20] sm:$0xff]
                %851 = vst [vmem:[%s841 + $0x20] sm:$0xff] %v850
                %v852 = vld [vmem:[%s840 + $0x28] sm:$0xff]
                %853 = vst [vmem:[%s841 + $0x28] sm:$0xff] %v852
                %v854 = vld [vmem:[%s840 + $0x30] sm:$0xff]
                %855 = vst [vmem:[%s841 + $0x30] sm:$0xff] %v854
                %v856 = vld [vmem:[%s840 + $0x38] sm:$0xff]
                %857 = vst [vmem:[%s841 + $0x38] sm:$0xff] %v856
                %v858 = vld [vmem:[%s840 + $0x40] sm:$0xff]
                %859 = vst [vmem:[%s841 + $0x40] sm:$0xff] %v858
                %v860 = vld [vmem:[%s840 + $0x48] sm:$0xff]
                %861 = vst [vmem:[%s841 + $0x48] sm:$0xff] %v860
                %v862 = vld [vmem:[%s840 + $0x50] sm:$0xff]
                %863 = vst [vmem:[%s841 + $0x50] sm:$0xff] %v862
                %v864 = vld [vmem:[%s840 + $0x58] sm:$0xff]
                %865 = vst [vmem:[%s841 + $0x58] sm:$0xff] %v864
                %v866 = vld [vmem:[%s840 + $0x60] sm:$0xff]
                %867 = vst [vmem:[%s841 + $0x60] sm:$0xff] %v866
                %v868 = vld [vmem:[%s840 + $0x68] sm:$0xff]
                %869 = vst [vmem:[%s841 + $0x68] sm:$0xff] %v868
                %v870 = vld [vmem:[%s840 + $0x70] sm:$0xff]
                %871 = vst [vmem:[%s841 + $0x70] sm:$0xff] %v870
                %v872 = vld [vmem:[%s840 + $0x78] sm:$0xff]
                %873 = vst [vmem:[%s841 + $0x78] sm:$0xff] %v872
                %s874 = sadd.s32 1, %s839
                %p875 = scmp.ge.s32.totalorder %s874, %s832
                %s876 = scalar_select %p875, 0, %s874
                %s877 = smul.u32 %s876, 128
                %s878 = smul.u32 %s876, 128
                %s879 = scalar_lea.vmem %s812, %s877 [#allocation3]
                %s880 = scalar_lea.vmem %s823, %s878
              $region69: #{dnn_regressor_forward.1} parent=63 // loop_footer
                %s836 = sadd.s32 %s834, 1
              $region70: #{dnn_regressor_forward.1} parent=63 // loop_footer_branch
                %833 = sbr.rel target = $region66
              $region71: #{dnn_regressor_forward.1} parent=63 // loop_exit
                _
              %s881 = sshrl.u32 %s819, 4
              %s882 = sand.u32 %s819, 15
              %s883 = smul.u32 %s881, 16
              %s884 = smul.u32 8, %s883
              %s885 = scalar_lea.vmem %s812, %s884 [#allocation3]
              %s886 = smul.u32 8, %s883
              %s887 = scalar_lea.vmem %s823, %s886
              // While loop
              $region72: #{dnn_regressor_forward.1} parent=63 // loop_pre_header
                _
              $region73: #{dnn_regressor_forward.1} parent=63 // loop_header
                %s889 = sphi 0, %s891
                %p890 = scmp.ge.s32.totalorder %s889, %s882
                %s894 = sphi 0, %s901
                %s895 = sphi %s885, %s904
                %s896 = sphi %s887, %s905
              $region74: #{dnn_regressor_forward.1} parent=63 // loop_header_branch
                %893 = sbr.rel (%p890) target = $region78
              $region75: #{dnn_regressor_forward.1} parent=63 // loop_body
                %v897 = vld [vmem:[%s895] sm:$0xff]
                %898 = vst [vmem:[%s896] sm:$0xff] %v897
                %s899 = sadd.s32 1, %s894
                %p900 = scmp.ge.s32.totalorder %s899, %s882
                %s901 = scalar_select %p900, 0, %s899
                %s902 = smul.u32 %s901, 8
                %s903 = smul.u32 %s901, 8
                %s904 = scalar_lea.vmem %s885, %s902 [#allocation3]
                %s905 = scalar_lea.vmem %s887, %s903
              $region76: #{dnn_regressor_forward.1} parent=63 // loop_footer
                %s891 = sadd.s32 %s889, 1
              $region77: #{dnn_regressor_forward.1} parent=63 // loop_footer_branch
                %888 = sbr.rel target = $region73
              $region78: #{dnn_regressor_forward.1} parent=63 // loop_exit
                _
            $region64: #{dnn_regressor_forward.1} parent=55 // pred_fallthru
              _
          $region56: #{dnn_regressor_forward.1} parent=51 // pred_fallthru
            _
          %984 = vnop
        $region52: #{dnn_regressor_forward.1} parent=47 // pred_fallthru
          _
      $region48: #{dnn_regressor_forward.1} parent=5 // pred_fallthru
        _
      %p985 = scmp.le.s32.totalorder 2, %s14
      // Predicated region
      $region101: #{dnn_regressor_forward.1} parent=5 // pred_check
        %p986 = pneg %p985
      $region102: #{dnn_regressor_forward.1} parent=5 // pred_check_branch
        %988 = sbr.rel (%p986) target = $region104
      $region103: #{dnn_regressor_forward.1} parent=5 // pred_region
        %s989 = ssub.s32 %s14, 2
        // Predicated region
        $region105: #{dnn_regressor_forward.1} parent=103 // pred_check
          %p990 = pneg %p195
        $region106: #{dnn_regressor_forward.1} parent=103 // pred_check_branch
          %992 = sbr.rel (%p990) target = $region108
        $region107: #{dnn_regressor_forward.1} parent=103 // pred_region
          %s993 = sand.u32 %s180, 1
          %s994 = sand.u32 %s180, 1
          %s995 = smul.addr %s994, 128
          %s996 = scalar_lea.vmem [#allocation3], %s995
        $region108: #{dnn_regressor_forward.1} parent=103 // pred_fallthru
          _
      $region104: #{dnn_regressor_forward.1} parent=5 // pred_fallthru
        _
    $region6: #{dnn_regressor_forward.1} parent=1 // loop_footer
      %s18 = sadd.s32 1, %s14
    $region7: #{dnn_regressor_forward.1} parent=1 // loop_footer_branch
      %13 = sbr.rel target = $region3
    $region8: #{dnn_regressor_forward.1} parent=1 // loop_exit
      _

</llo_original>
